<compile_context>
chip_gen: v5e
topology: v5e:2x2
jax: 0.10.0
libtpu: 0.0.40
codegen_flags: <defaults>
</compile_context>

<pallas_src>
import functools
import math

import jax
import jax.numpy as jnp
from jax import lax
from jax.experimental import pallas as pl
from jax.experimental.pallas import tpu as pltpu


# ---------------------------------------------------------------------------
# Fast path: table resident in VMEM, gather = one-hot @ table on the MXU.
# ---------------------------------------------------------------------------
def _token_embedding_vmem_kernel(ids_ref, tbl_ref, out_ref, *, scale):
    """ids_ref: (block_t, 1) int32 VMEM; tbl_ref: (vocab, d_model) VMEM
    (same block index every grid step -> fetched once, resident); out_ref:
    (block_t, d_model) lane-dense output tile."""
    block_t = ids_ref.shape[0]
    vocab = tbl_ref.shape[0]

    ids_col = ids_ref[...]                                         # (block_t, 1)
    col_iota = lax.broadcasted_iota(jnp.int32, (block_t, vocab), 1)
    onehot = (ids_col == col_iota).astype(tbl_ref.dtype)           # (block_t, vocab)

    # HIGHEST precision keeps the f32 table rows (effectively) exact through
    # the MXU; accumulation is f32.
    rows = jnp.dot(onehot, tbl_ref[...],
                   preferred_element_type=jnp.float32,
                   precision=lax.Precision.HIGHEST)                # (block_t, d_model)

    out_ref[...] = (rows * scale).astype(out_ref.dtype)


# ---------------------------------------------------------------------------
# Large-table path: table stays in HBM; per-row DMA gather straight into the
# pipelined output tile through a ring of `nbuf` in-flight copies.
# ---------------------------------------------------------------------------
def _token_embedding_dma_kernel(ids_ref, tbl_hbm, out_ref, sems, *,
                                scale, block_t, nbuf):
    """ids_ref: SMEM (T_pad,) int32 (scalar prefetch); tbl_hbm: HBM table;
    out_ref: (block_t, d_model) VMEM output tile (also the DMA destination);
    sems: ring of `nbuf` DMA semaphores."""
    base = pl.program_id(0) * block_t

    def row_copy(j):
        # Rebuild the identical descriptor for start() and wait(): the row id
        # is re-read from SMEM, so src/dst/sem can never drift apart.
        row = ids_ref[base + j]
        return pltpu.make_async_copy(
            tbl_hbm.at[pl.ds(row, 1)],        # (1, d_model) table row in HBM
            out_ref.at[pl.ds(j, 1)],          # straight into the output tile
            sems.at[j % nbuf],
        )

    # Prime the ring (nbuf is a small static int -> fully unrolled at trace time).
    for j in range(nbuf):
        row_copy(j).start()

    # Steady state: unconditionally wait slot j, then issue row j + nbuf on the
    # now-free semaphore slot.  No branch / clamp in the hot loop, and the SMEM
    # id read for the next row happens before the wait.
    if block_t > nbuf:
        def steady(j, carry):
            nxt = row_copy(j + nbuf)          # descriptor (SMEM read) before the wait
            row_copy(j).wait()
            nxt.start()
            return carry

        lax.fori_loop(0, block_t - nbuf, steady, 0, unroll=8)

    # Drain the last nbuf copies.
    for j in range(block_t - nbuf, block_t):
        row_copy(j).wait()

    # Scale in f32 (parity with an f32 reference even for bf16 tables).
    out_ref[...] = (out_ref[...].astype(jnp.float32) * scale).astype(out_ref.dtype)
    # TODO(synk): cross-step prefetch of the next block's first nbuf rows into a
    # small dedicated scratch region would also hide the per-step priming stall.


# ---------------------------------------------------------------------------
# Wrapper
# ---------------------------------------------------------------------------
def _pick_block_t(T, block_t, align):
    """Tokens per grid step: <= block_t, `align`-aligned, dividing T if possible
    (an exact divisor avoids padding and the wrapper-side tail slice)."""
    if T <= block_t:
        return T                                  # single block, no pad, no slice
    block_t = max(align, (block_t // align) * align)
    best = None
    for cand in range(block_t, align - 1, -align):
        if T % cand == 0:
            best = cand
            break
    if best is not None and best * 4 >= block_t:
        return best
    return block_t                                # fall back to pad + tail slice


def token_embedding(x_ids, emb_table, *, block_t=None, nbuf=16,
                    use_vmem_table=None, vmem_table_budget=4 * 1024 * 1024):
    """TokenEmbedding forward: emb_table[x_ids] * sqrt(d_model)."""
    lead_shape = x_ids.shape
    T = int(x_ids.size)
    vocab, d_model = emb_table.shape
    scale = float(math.sqrt(d_model))
    itemsize = emb_table.dtype.itemsize
    table_bytes = vocab * d_model * itemsize

    if use_vmem_table is None:
        # Small tables: keep the table VMEM-resident and gather on the MXU.
        use_vmem_table = (table_bytes <= vmem_table_budget) and (vocab <= 2048)

    if block_t is None:
        # Keep the double-buffered output tile well inside the scoped VMEM
        # default on every generation (v7x: 64 MiB physical / 32 MiB scoped).
        max_bt = max(8, (8 * 1024 * 1024) // max(1, d_model * itemsize))
        block_t = min(256 if use_vmem_table else 512, max_bt)

    align = 128 if use_vmem_table else 8
    block_t = _pick_block_t(T, block_t, align)
    grid_t = pl.cdiv(T, block_t)
    T_pad = grid_t * block_t

    ids_flat = x_ids.reshape(T).astype(jnp.int32)
    if T_pad != T:
        # Padded ids gather row 0; those rows are sliced off below (harmless).
        ids_flat = jnp.pad(ids_flat, (0, T_pad - T))

    if use_vmem_table:
        out_flat = pl.pallas_call(
            functools.partial(_token_embedding_vmem_kernel, scale=scale),
            out_shape=jax.ShapeDtypeStruct((T_pad, d_model), emb_table.dtype),
            grid_spec=pltpu.PrefetchScalarGridSpec(
                num_scalar_prefetch=0,
                grid=(grid_t,),
                in_specs=[
                    pl.BlockSpec((block_t, 1), lambda i: (i, 0)),       # token ids
                    pl.BlockSpec((vocab, d_model), lambda i: (0, 0)),   # resident table
                ],
                out_specs=pl.BlockSpec((block_t, d_model), lambda i: (i, 0)),
            ),
            compiler_params=pltpu.CompilerParams(
                # Token blocks are independent -> shardable across v7x's 2 TCs.
                dimension_semantics=("parallel",)),
        )(ids_flat.reshape(T_pad, 1), emb_table)
    else:
        nbuf = max(1, min(nbuf, block_t))
        # TODO(synk): for very long sequences (T in the hundreds of thousands)
        # pass ids as a blocked SMEM input instead of scalar prefetch so SMEM
        # stays O(block_t); scalar prefetch pads to next_pow2(4 * T_pad) bytes.
        out_flat = pl.pallas_call(
            functools.partial(_token_embedding_dma_kernel,
                              scale=scale, block_t=block_t, nbuf=nbuf),
            out_shape=jax.ShapeDtypeStruct((T_pad, d_model), emb_table.dtype),
            grid_spec=pltpu.PrefetchScalarGridSpec(
                num_scalar_prefetch=1,                        # ids -> SMEM
                grid=(grid_t,),
                in_specs=[pl.BlockSpec(memory_space=pl.ANY)],  # table stays in HBM
                out_specs=pl.BlockSpec((block_t, d_model), lambda i, ids: (i, 0)),
                scratch_shapes=[pltpu.SemaphoreType.DMA((nbuf,))],
            ),
            compiler_params=pltpu.CompilerParams(
                dimension_semantics=("parallel",)),
        )(ids_flat, emb_table)

    out = out_flat if T_pad == T else out_flat[:T]
    return out.reshape(lead_shape + (d_model,))


if __name__ == "__main__":
    d_model = 128
    vocab_size = 256
    seq_len = 8
    batch = 2

    key = jax.random.PRNGKey(0)
    k_ids, k_emb, k_ids2 = jax.random.split(key, 3)

    # nn.Embedding default init is N(0, 1).
    emb_table = jax.random.normal(k_emb, (vocab_size, d_model), dtype=jnp.float32)
    # Token ids in (seq_len, batch) = PyTorch Transformer (T, N) convention.
    x = jax.random.randint(k_ids, (seq_len, batch), 0, vocab_size, dtype=jnp.int32)

    ref = emb_table[x] * math.sqrt(d_model)

    # 1) Fast path: 256x128 f32 table (128 KiB) is VMEM-resident, one-hot MXU
    #    gather.  Tolerance covers the MXU multi-pass f32 accumulation.
    out = jax.block_until_ready(token_embedding(x, emb_table))
    assert out.shape == (seq_len, batch, d_model)
    assert jnp.allclose(out, ref, atol=5e-4, rtol=1e-5), "fast (VMEM) path mismatch"

    # 2) Large-table path forced on the same inputs: HBM table + ring-buffered
    #    per-row DMA gather (single block -> prime + drain).
    out_dma = jax.block_until_ready(
        token_embedding(x, emb_table, use_vmem_table=False))
    assert jnp.allclose(out_dma, ref, atol=1e-5, rtol=1e-5), "DMA path mismatch"

    # 3) Large-table path, multi-block: exercises prime / steady (unrolled
    #    fori_loop) / drain and the blocked, pipelined output.
    x2 = jax.random.randint(k_ids2, (40, 8), 0, vocab_size, dtype=jnp.int32)
    ref2 = emb_table[x2] * math.sqrt(d_model)
    out_dma2 = jax.block_until_ready(
        token_embedding(x2, emb_table, use_vmem_table=False, block_t=64, nbuf=8))
    assert out_dma2.shape == (40, 8, d_model)
    assert jnp.allclose(out_dma2, ref2, atol=1e-5, rtol=1e-5), "DMA multi-block mismatch"

    print("KERNEL_OK")
</pallas_src>

<mosaic_0001>
module attributes {stable_mosaic.version = 11 : i64} {
  func.func @_token_embedding_vmem_kernel(%arg0: i32, %arg1: memref<16x1xi32, #tpu.memory_space<vmem>>, %arg2: memref<256x128xf32, #tpu.memory_space<vmem>>, %arg3: memref<16x128xf32, #tpu.memory_space<vmem>>) attributes {dimension_semantics = [#tpu.dimension_semantics<parallel>], iteration_bounds = array<i64: 1>, scalar_prefetch = 0 : i64, scratch_operands = 0 : i64, tpu.core_type = #tpu.core_type<tc>, window_params = [{transform_indices = @transform_0, window_bounds = array<i64: 16, 1>}, {pipeline_mode = #tpu.pipeline_mode<synchronous>, transform_indices = @transform_1, window_bounds = array<i64: 256, 128>}, {transform_indices = @transform_2, window_bounds = array<i64: 16, 128>}]} {
    %c0 = arith.constant 0 : index
    %c0_0 = arith.constant 0 : index
    %0 = vector.load %arg1[%c0, %c0_0] : memref<16x1xi32, #tpu.memory_space<vmem>>, vector<16x1xi32>
    %1 = tpu.iota {dimensions = array<i32: 1>} : vector<16x256xi32>
    %2 = vector.broadcast %0 : vector<16x1xi32> to vector<16x256xi32>
    %3 = arith.cmpi eq, %2, %1 : vector<16x256xi32>
    %4 = arith.extui %3 : vector<16x256xi1> to vector<16x256xi32>
    %5 = arith.sitofp %4 : vector<16x256xi32> to vector<16x256xf32>
    %c0_1 = arith.constant 0 : index
    %c0_2 = arith.constant 0 : index
    %6 = vector.load %arg2[%c0_1, %c0_2] : memref<256x128xf32, #tpu.memory_space<vmem>>, vector<256x128xf32>
    %cst = arith.constant dense<0.000000e+00> : vector<16x128xf32>
    %7 = tpu.matmul %5, %6, %cst {dimension_numbers = #tpu.dot_dimension_numbers<[1], [0], [0], [1], [0, 0, 1, 1], [], []>, precision = #tpu.contract_precision<fp32>} : vector<16x256xf32>, vector<256x128xf32>, vector<16x128xf32> -> vector<16x128xf32>
    %cst_3 = arith.constant 11.3137083 : f32
    %8 = vector.broadcast %cst_3 : f32 to vector<16x128xf32>
    %9 = arith.mulf %7, %8 : vector<16x128xf32>
    %c0_4 = arith.constant 0 : index
    %c0_5 = arith.constant 0 : index
    %10 = vector.load %arg3[%c0_4, %c0_5] : memref<16x128xf32, #tpu.memory_space<vmem>>, vector<16x128xf32>
    tpu.vector_store %arg3[%c0_4, %c0_5], %9 {strides = array<i32>} : memref<16x128xf32, #tpu.memory_space<vmem>>, vector<16x128xf32>,
    return
  }
  func.func @transform_0(%arg0: i32) -> (i32, i32) {
    %c0_i32 = arith.constant 0 : i32
    %c0_i32_0 = arith.constant 0 : i32
    return %arg0, %c0_i32 : i32, i32
  }
  func.func @transform_1(%arg0: i32) -> (i32, i32) {
    %c0_i32 = arith.constant 0 : i32
    %c0_i32_0 = arith.constant 0 : i32
    %c0_i32_1 = arith.constant 0 : i32
    return %c0_i32, %c0_i32_0 : i32, i32
  }
  func.func @transform_2(%arg0: i32) -> (i32, i32) {
    %c0_i32 = arith.constant 0 : i32
    %c0_i32_0 = arith.constant 0 : i32
    return %arg0, %c0_i32 : i32, i32
  }
}

</mosaic_0001>

<llo_original>
// kernel: tpu_custom_call.1
$region0: #{tpu_custom_call.1}
  #allocation0 [shape = 'u32[]', space=smem, size = 0x4, offset = 0x4, fixed_abs, tag = 'smem constant byte address 0x4 - core index']
  #allocation1 [shape = 'u32[72,128]{1,0:T(1,128)}', space=vmem, size = 0x9000, scoped, tag = 'internal scratch']
  %s0 = inlined_call_operand.vmem [shape: s32[16,1], index: 0, kind: input, shape index: {}]
  %s1 = inlined_call_operand.hbm [shape: f32[256,128], index: 1, kind: input, shape index: {}]
  %s2 = inlined_call_operand.hbm [shape: f32[16,128], index: 2, kind: output, shape index: {}]
  %s3 = sld [smem:[#allocation0]]
  $region22: #{tpu_custom_call.1} parent=0
    _
  %s5 = ssub.s32 1, %s3
  %s6 = scalar_select 0, %s5, %s3
  $region1: #{tpu_custom_call.1} parent=0
    #allocation2 [shape = 'u8[131072]{0}', space=vmem, size = 0x20000, scoped, tag = 'input window, operand 1, single buffered']
    #allocation3 [shape = 's32[1]{0}', space=sflag, size = 0x4, scoped, tag = 'scoped memory for tpu_custom_call.1']
    #allocation4 [shape = 's32[1]{0}', space=sflag, size = 0x4, scoped, tag = 'scoped memory for tpu_custom_call.1']
    #allocation5 [shape = 'u8[8192]{0}', space=vmem, size = 0x2000, scoped, tag = 'output window, operand 0, single buffered']
    %7 = vsyncpa [#allocation3], 0
    %8 = vsyncpa [#allocation4], 0
    // Predicated region
    $region2: #{tpu_custom_call.1} parent=1 // pred_check
      _
    $region3: #{tpu_custom_call.1} parent=1 // pred_check_branch
      %10 = sbr.rel (0) target = $region5
    $region4: #{tpu_custom_call.1} parent=1 // pred_region
      _
    $region5: #{tpu_custom_call.1} parent=1 // pred_fallthru
      _
    // Predicated region
    $region6: #{tpu_custom_call.1} parent=1 // pred_check
      _
    $region7: #{tpu_custom_call.1} parent=1 // pred_check_branch
      %12 = sbr.rel (0) target = $region9
    $region8: #{tpu_custom_call.1} parent=1 // pred_region
      %14 = vsyncadd [#allocation3], 0
      %s15 = sshll.u32 %s1, 4
      %s16 = int_to_ptr.hbm [resolvable:$true] %s15
      %s17 = sshll.u32 [#allocation2], 4
      %s18 = int_to_ptr.vmem [resolvable:$true] %s17
      %23 = dma.hbm_to_vmem [thread:$0]  %s16, 4096, %s18, [#allocation3], 128, 128, 8
    $region9: #{tpu_custom_call.1} parent=1 // pred_fallthru
      _
    // Predicated region
    $region10: #{tpu_custom_call.1} parent=1 // pred_check
      _
    $region11: #{tpu_custom_call.1} parent=1 // pred_check_branch
      %25 = sbr.rel (0) target = $region13
    $region12: #{tpu_custom_call.1} parent=1 // pred_region
      %27 = dma.done [#allocation3], 4096
    $region13: #{tpu_custom_call.1} parent=1 // pred_fallthru
      _
    %v28 = vld [vmem:[%s0] sm:$0xff]
    %v29 = vld [vmem:[%s0 + $0x8] sm:$0xff]
    %v30 = vlaneseq
    %v31 = vand.u32 %v30, 127
    %v32 = vadd.s32 %v31, 128
    %33 = vset.pattern.permute.xlu0 0
    %34 = vperm.xlu0 %33, %v28
    %v35 = vpop.permute.xlu0 %34
    %36 = vset.pattern.permute.xlu0 0
    %37 = vperm.xlu0 %36, %v29
    %v38 = vpop.permute.xlu0 %37
    %vm39 = vcmp.eq.s32.totalorder %v35, %v31
    %vm40 = vcmp.eq.s32.totalorder %v35, %v32
    %vm41 = vcmp.eq.s32.totalorder %v38, %v31
    %vm42 = vcmp.eq.s32.totalorder %v38, %v32
    %v43 = vsel %vm39, 1, 0
    %v44 = vsel %vm40, 1, 0
    %v45 = vsel %vm41, 1, 0
    %v46 = vsel %vm42, 1, 0
    %v47 = vcvt.s32.f32 %v43
    %v48 = vcvt.s32.f32 %v44
    %v49 = vcvt.s32.f32 %v45
    %v50 = vcvt.s32.f32 %v46
    %v51 = vld [vmem:[#allocation2] sm:$0xff]
    %v52 = vld [vmem:[#allocation2 + $0x8] sm:$0xff]
    %v53 = vld [vmem:[#allocation2 + $0x10] sm:$0xff]
    %v54 = vld [vmem:[#allocation2 + $0x18] sm:$0xff]
    %v55 = vld [vmem:[#allocation2 + $0x20] sm:$0xff]
    %v56 = vld [vmem:[#allocation2 + $0x28] sm:$0xff]
    %v57 = vld [vmem:[#allocation2 + $0x30] sm:$0xff]
    %v58 = vld [vmem:[#allocation2 + $0x38] sm:$0xff]
    %v59 = vld [vmem:[#allocation2 + $0x40] sm:$0xff]
    %v60 = vld [vmem:[#allocation2 + $0x48] sm:$0xff]
    %v61 = vld [vmem:[#allocation2 + $0x50] sm:$0xff]
    %v62 = vld [vmem:[#allocation2 + $0x58] sm:$0xff]
    %v63 = vld [vmem:[#allocation2 + $0x60] sm:$0xff]
    %v64 = vld [vmem:[#allocation2 + $0x68] sm:$0xff]
    %v65 = vld [vmem:[#allocation2 + $0x70] sm:$0xff]
    %v66 = vld [vmem:[#allocation2 + $0x78] sm:$0xff]
    %v67 = vld [vmem:[#allocation2 + $0x80] sm:$0xff]
    %v68 = vld [vmem:[#allocation2 + $0x88] sm:$0xff]
    %v69 = vld [vmem:[#allocation2 + $0x90] sm:$0xff]
    %v70 = vld [vmem:[#allocation2 + $0x98] sm:$0xff]
    %v71 = vld [vmem:[#allocation2 + $0xa0] sm:$0xff]
    %v72 = vld [vmem:[#allocation2 + $0xa8] sm:$0xff]
    %v73 = vld [vmem:[#allocation2 + $0xb0] sm:$0xff]
    %v74 = vld [vmem:[#allocation2 + $0xb8] sm:$0xff]
    %v75 = vld [vmem:[#allocation2 + $0xc0] sm:$0xff]
    %v76 = vld [vmem:[#allocation2 + $0xc8] sm:$0xff]
    %v77 = vld [vmem:[#allocation2 + $0xd0] sm:$0xff]
    %v78 = vld [vmem:[#allocation2 + $0xd8] sm:$0xff]
    %v79 = vld [vmem:[#allocation2 + $0xe0] sm:$0xff]
    %v80 = vld [vmem:[#allocation2 + $0xe8] sm:$0xff]
    %v81 = vld [vmem:[#allocation2 + $0xf0] sm:$0xff]
    %v82 = vld [vmem:[#allocation2 + $0xf8] sm:$0xff]
    %v83 = vand.u32 %v66, 4294901760
    %84 = vmatpush.msra.mxu0 %v83
    %v85 = vand.u32 %v65, 4294901760
    %86 = vmatpush.msra.mxu0 %v85
    %v87 = vand.u32 %v64, 4294901760
    %88 = vmatpush.msra.mxu0 %v87
    %v89 = vand.u32 %v63, 4294901760
    %90 = vmatpush.msra.mxu0 %v89
    %v91 = vand.u32 %v62, 4294901760
    %92 = vmatpush.msra.mxu0 %v91
    %v93 = vand.u32 %v61, 4294901760
    %94 = vmatpush.msra.mxu0 %v93
    %v95 = vand.u32 %v60, 4294901760
    %96 = vmatpush.msra.mxu0 %v95
    %v97 = vand.u32 %v59, 4294901760
    %98 = vmatpush.msra.mxu0 %v97
    %v99 = vand.u32 %v58, 4294901760
    %100 = vmatpush.msra.mxu0 %v99
    %v101 = vand.u32 %v57, 4294901760
    %102 = vmatpush.msra.mxu0 %v101
    %v103 = vand.u32 %v56, 4294901760
    %104 = vmatpush.msra.mxu0 %v103
    %v105 = vand.u32 %v55, 4294901760
    %106 = vmatpush.msra.mxu0 %v105
    %v107 = vand.u32 %v54, 4294901760
    %108 = vmatpush.msra.mxu0 %v107
    %v109 = vand.u32 %v53, 4294901760
    %110 = vmatpush.msra.mxu0 %v109
    %v111 = vand.u32 %v52, 4294901760
    %112 = vmatpush.msra.mxu0 %v111
    %v113 = vand.u32 %v51, 4294901760
    %114 = vmatpush.msra.mxu0 %v113
    %v115 = vand.u32 %v47, 4294901760
    %v116 = vsub.f32 %v47, %v115
    %v117 = vand.u32 %v116, 4294901760
    %v118 = vsub.f32 %v116, %v117
    %v119 = vand.u32 %v118, 4294901760
    %120 = vmatmul.f32.gmra.mxu0 %v119
    %v121 = vpop.f32.mrf.mxu0
    %v122 = vadd.f32 0.0, %v121
    %v123 = vand.u32 %v49, 4294901760
    %v124 = vsub.f32 %v49, %v123
    %v125 = vand.u32 %v124, 4294901760
    %v126 = vsub.f32 %v124, %v125
    %v127 = vand.u32 %v126, 4294901760
    %128 = vmatmul.f32.gmra.mxu0 %v127
    %v129 = vpop.f32.mrf.mxu0
    %v130 = vadd.f32 0.0, %v129
    %131 = vdwg.mxu0
    %v132 = vand.u32 %v66, 4294901760
    %v133 = vsub.f32 %v66, %v132
    %v134 = vand.u32 %v133, 4294901760
    %v135 = vsub.f32 %v133, %v134
    %v136 = vand.u32 %v135, 4294901760
    %137 = vmatpush.msra.mxu0 %v136
    %v138 = vand.u32 %v65, 4294901760
    %v139 = vsub.f32 %v65, %v138
    %v140 = vand.u32 %v139, 4294901760
    %v141 = vsub.f32 %v139, %v140
    %v142 = vand.u32 %v141, 4294901760
    %143 = vmatpush.msra.mxu0 %v142
    %v144 = vand.u32 %v64, 4294901760
    %v145 = vsub.f32 %v64, %v144
    %v146 = vand.u32 %v145, 4294901760
    %v147 = vsub.f32 %v145, %v146
    %v148 = vand.u32 %v147, 4294901760
    %149 = vmatpush.msra.mxu0 %v148
    %v150 = vand.u32 %v63, 4294901760
    %v151 = vsub.f32 %v63, %v150
    %v152 = vand.u32 %v151, 4294901760
    %v153 = vsub.f32 %v151, %v152
    %v154 = vand.u32 %v153, 4294901760
    %155 = vmatpush.msra.mxu0 %v154
    %v156 = vand.u32 %v62, 4294901760
    %v157 = vsub.f32 %v62, %v156
    %v158 = vand.u32 %v157, 4294901760
    %v159 = vsub.f32 %v157, %v158
    %v160 = vand.u32 %v159, 4294901760
    %161 = vmatpush.msra.mxu0 %v160
    %v162 = vand.u32 %v61, 4294901760
    %v163 = vsub.f32 %v61, %v162
    %v164 = vand.u32 %v163, 4294901760
    %v165 = vsub.f32 %v163, %v164
    %v166 = vand.u32 %v165, 4294901760
    %167 = vmatpush.msra.mxu0 %v166
    %v168 = vand.u32 %v60, 4294901760
    %v169 = vsub.f32 %v60, %v168
    %v170 = vand.u32 %v169, 4294901760
    %v171 = vsub.f32 %v169, %v170
    %v172 = vand.u32 %v171, 4294901760
    %173 = vmatpush.msra.mxu0 %v172
    %v174 = vand.u32 %v59, 4294901760
    %v175 = vsub.f32 %v59, %v174
    %v176 = vand.u32 %v175, 4294901760
    %v177 = vsub.f32 %v175, %v176
    %v178 = vand.u32 %v177, 4294901760
    %179 = vmatpush.msra.mxu0 %v178
    %v180 = vand.u32 %v58, 4294901760
    %v181 = vsub.f32 %v58, %v180
    %v182 = vand.u32 %v181, 4294901760
    %v183 = vsub.f32 %v181, %v182
    %v184 = vand.u32 %v183, 4294901760
    %185 = vmatpush.msra.mxu0 %v184
    %v186 = vand.u32 %v57, 4294901760
    %v187 = vsub.f32 %v57, %v186
    %v188 = vand.u32 %v187, 4294901760
    %v189 = vsub.f32 %v187, %v188
    %v190 = vand.u32 %v189, 4294901760
    %191 = vmatpush.msra.mxu0 %v190
    %v192 = vand.u32 %v56, 4294901760
    %v193 = vsub.f32 %v56, %v192
    %v194 = vand.u32 %v193, 4294901760
    %v195 = vsub.f32 %v193, %v194
    %v196 = vand.u32 %v195, 4294901760
    %197 = vmatpush.msra.mxu0 %v196
    %v198 = vand.u32 %v55, 4294901760
    %v199 = vsub.f32 %v55, %v198
    %v200 = vand.u32 %v199, 4294901760
    %v201 = vsub.f32 %v199, %v200
    %v202 = vand.u32 %v201, 4294901760
    %203 = vmatpush.msra.mxu0 %v202
    %v204 = vand.u32 %v54, 4294901760
    %v205 = vsub.f32 %v54, %v204
    %v206 = vand.u32 %v205, 4294901760
    %v207 = vsub.f32 %v205, %v206
    %v208 = vand.u32 %v207, 4294901760
    %209 = vmatpush.msra.mxu0 %v208
    %v210 = vand.u32 %v53, 4294901760
    %v211 = vsub.f32 %v53, %v210
    %v212 = vand.u32 %v211, 4294901760
    %v213 = vsub.f32 %v211, %v212
    %v214 = vand.u32 %v213, 4294901760
    %215 = vmatpush.msra.mxu0 %v214
    %v216 = vand.u32 %v52, 4294901760
    %v217 = vsub.f32 %v52, %v216
    %v218 = vand.u32 %v217, 4294901760
    %v219 = vsub.f32 %v217, %v218
    %v220 = vand.u32 %v219, 4294901760
    %221 = vmatpush.msra.mxu0 %v220
    %v222 = vand.u32 %v51, 4294901760
    %v223 = vsub.f32 %v51, %v222
    %v224 = vand.u32 %v223, 4294901760
    %v225 = vsub.f32 %v223, %v224
    %v226 = vand.u32 %v225, 4294901760
    %227 = vmatpush.msra.mxu0 %v226
    %v228 = vand.u32 %v47, 4294901760
    %229 = vmatmul.f32.gmra.mxu0 %v228
    %v230 = vpop.f32.mrf.mxu0
    %v231 = vadd.f32 %v122, %v230
    %v232 = vand.u32 %v49, 4294901760
    %233 = vmatmul.f32.gmra.mxu0 %v232
    %v234 = vpop.f32.mrf.mxu0
    %v235 = vadd.f32 %v130, %v234
    %236 = vdwg.mxu0
    %v237 = vand.u32 %v66, 4294901760
    %v238 = vsub.f32 %v66, %v237
    %239 = vmatpush.msra.mxu0 %v238
    %v240 = vand.u32 %v65, 4294901760
    %v241 = vsub.f32 %v65, %v240
    %242 = vmatpush.msra.mxu0 %v241
    %v243 = vand.u32 %v64, 4294901760
    %v244 = vsub.f32 %v64, %v243
    %245 = vmatpush.msra.mxu0 %v244
    %v246 = vand.u32 %v63, 4294901760
    %v247 = vsub.f32 %v63, %v246
    %248 = vmatpush.msra.mxu0 %v247
    %v249 = vand.u32 %v62, 4294901760
    %v250 = vsub.f32 %v62, %v249
    %251 = vmatpush.msra.mxu0 %v250
    %v252 = vand.u32 %v61, 4294901760
    %v253 = vsub.f32 %v61, %v252
    %254 = vmatpush.msra.mxu0 %v253
    %v255 = vand.u32 %v60, 4294901760
    %v256 = vsub.f32 %v60, %v255
    %257 = vmatpush.msra.mxu0 %v256
    %v258 = vand.u32 %v59, 4294901760
    %v259 = vsub.f32 %v59, %v258
    %260 = vmatpush.msra.mxu0 %v259
    %v261 = vand.u32 %v58, 4294901760
    %v262 = vsub.f32 %v58, %v261
    %263 = vmatpush.msra.mxu0 %v262
    %v264 = vand.u32 %v57, 4294901760
    %v265 = vsub.f32 %v57, %v264
    %266 = vmatpush.msra.mxu0 %v265
    %v267 = vand.u32 %v56, 4294901760
    %v268 = vsub.f32 %v56, %v267
    %269 = vmatpush.msra.mxu0 %v268
    %v270 = vand.u32 %v55, 4294901760
    %v271 = vsub.f32 %v55, %v270
    %272 = vmatpush.msra.mxu0 %v271
    %v273 = vand.u32 %v54, 4294901760
    %v274 = vsub.f32 %v54, %v273
    %275 = vmatpush.msra.mxu0 %v274
    %v276 = vand.u32 %v53, 4294901760
    %v277 = vsub.f32 %v53, %v276
    %278 = vmatpush.msra.mxu0 %v277
    %v279 = vand.u32 %v52, 4294901760
    %v280 = vsub.f32 %v52, %v279
    %281 = vmatpush.msra.mxu0 %v280
    %v282 = vand.u32 %v51, 4294901760
    %v283 = vsub.f32 %v51, %v282
    %284 = vmatpush.msra.mxu0 %v283
    %v285 = vand.u32 %v47, 4294901760
    %v286 = vsub.f32 %v47, %v285
    %287 = vmatmul.f32.gmra.mxu0 %v286
    %v288 = vpop.f32.mrf.mxu0
    %v289 = vadd.f32 %v231, %v288
    %v290 = vand.u32 %v49, 4294901760
    %v291 = vsub.f32 %v49, %v290
    %292 = vmatmul.f32.gmra.mxu0 %v291
    %v293 = vpop.f32.mrf.mxu0
    %v294 = vadd.f32 %v235, %v293
    %295 = vdwg.mxu0
    %v296 = vand.u32 %v66, 4294901760
    %297 = vmatpush.msra.mxu0 %v296
    %v298 = vand.u32 %v65, 4294901760
    %299 = vmatpush.msra.mxu0 %v298
    %v300 = vand.u32 %v64, 4294901760
    %301 = vmatpush.msra.mxu0 %v300
    %v302 = vand.u32 %v63, 4294901760
    %303 = vmatpush.msra.mxu0 %v302
    %v304 = vand.u32 %v62, 4294901760
    %305 = vmatpush.msra.mxu0 %v304
    %v306 = vand.u32 %v61, 4294901760
    %307 = vmatpush.msra.mxu0 %v306
    %v308 = vand.u32 %v60, 4294901760
    %309 = vmatpush.msra.mxu0 %v308
    %v310 = vand.u32 %v59, 4294901760
    %311 = vmatpush.msra.mxu0 %v310
    %v312 = vand.u32 %v58, 4294901760
    %313 = vmatpush.msra.mxu0 %v312
    %v314 = vand.u32 %v57, 4294901760
    %315 = vmatpush.msra.mxu0 %v314
    %v316 = vand.u32 %v56, 4294901760
    %317 = vmatpush.msra.mxu0 %v316
    %v318 = vand.u32 %v55, 4294901760
    %319 = vmatpush.msra.mxu0 %v318
    %v320 = vand.u32 %v54, 4294901760
    %321 = vmatpush.msra.mxu0 %v320
    %v322 = vand.u32 %v53, 4294901760
    %323 = vmatpush.msra.mxu0 %v322
    %v324 = vand.u32 %v52, 4294901760
    %325 = vmatpush.msra.mxu0 %v324
    %v326 = vand.u32 %v51, 4294901760
    %327 = vmatpush.msra.mxu0 %v326
    %v328 = vand.u32 %v47, 4294901760
    %v329 = vsub.f32 %v47, %v328
    %v330 = vand.u32 %v329, 4294901760
    %331 = vmatmul.f32.gmra.mxu0 %v330
    %v332 = vpop.f32.mrf.mxu0
    %v333 = vadd.f32 %v289, %v332
    %v334 = vand.u32 %v49, 4294901760
    %v335 = vsub.f32 %v49, %v334
    %v336 = vand.u32 %v335, 4294901760
    %337 = vmatmul.f32.gmra.mxu0 %v336
    %v338 = vpop.f32.mrf.mxu0
    %v339 = vadd.f32 %v294, %v338
    %340 = vdwg.mxu0
    %v341 = vand.u32 %v66, 4294901760
    %v342 = vsub.f32 %v66, %v341
    %v343 = vand.u32 %v342, 4294901760
    %344 = vmatpush.msra.mxu0 %v343
    %v345 = vand.u32 %v65, 4294901760
    %v346 = vsub.f32 %v65, %v345
    %v347 = vand.u32 %v346, 4294901760
    %348 = vmatpush.msra.mxu0 %v347
    %v349 = vand.u32 %v64, 4294901760
    %v350 = vsub.f32 %v64, %v349
    %v351 = vand.u32 %v350, 4294901760
    %352 = vmatpush.msra.mxu0 %v351
    %v353 = vand.u32 %v63, 4294901760
    %v354 = vsub.f32 %v63, %v353
    %v355 = vand.u32 %v354, 4294901760
    %356 = vmatpush.msra.mxu0 %v355
    %v357 = vand.u32 %v62, 4294901760
    %v358 = vsub.f32 %v62, %v357
    %v359 = vand.u32 %v358, 4294901760
    %360 = vmatpush.msra.mxu0 %v359
    %v361 = vand.u32 %v61, 4294901760
    %v362 = vsub.f32 %v61, %v361
    %v363 = vand.u32 %v362, 4294901760
    %364 = vmatpush.msra.mxu0 %v363
    %v365 = vand.u32 %v60, 4294901760
    %v366 = vsub.f32 %v60, %v365
    %v367 = vand.u32 %v366, 4294901760
    %368 = vmatpush.msra.mxu0 %v367
    %v369 = vand.u32 %v59, 4294901760
    %v370 = vsub.f32 %v59, %v369
    %v371 = vand.u32 %v370, 4294901760
    %372 = vmatpush.msra.mxu0 %v371
    %v373 = vand.u32 %v58, 4294901760
    %v374 = vsub.f32 %v58, %v373
    %v375 = vand.u32 %v374, 4294901760
    %376 = vmatpush.msra.mxu0 %v375
    %v377 = vand.u32 %v57, 4294901760
    %v378 = vsub.f32 %v57, %v377
    %v379 = vand.u32 %v378, 4294901760
    %380 = vmatpush.msra.mxu0 %v379
    %v381 = vand.u32 %v56, 4294901760
    %v382 = vsub.f32 %v56, %v381
    %v383 = vand.u32 %v382, 4294901760
    %384 = vmatpush.msra.mxu0 %v383
    %v385 = vand.u32 %v55, 4294901760
    %v386 = vsub.f32 %v55, %v385
    %v387 = vand.u32 %v386, 4294901760
    %388 = vmatpush.msra.mxu0 %v387
    %v389 = vand.u32 %v54, 4294901760
    %v390 = vsub.f32 %v54, %v389
    %v391 = vand.u32 %v390, 4294901760
    %392 = vmatpush.msra.mxu0 %v391
    %v393 = vand.u32 %v53, 4294901760
    %v394 = vsub.f32 %v53, %v393
    %v395 = vand.u32 %v394, 4294901760
    %396 = vmatpush.msra.mxu0 %v395
    %v397 = vand.u32 %v52, 4294901760
    %v398 = vsub.f32 %v52, %v397
    %v399 = vand.u32 %v398, 4294901760
    %400 = vmatpush.msra.mxu0 %v399
    %v401 = vand.u32 %v51, 4294901760
    %v402 = vsub.f32 %v51, %v401
    %v403 = vand.u32 %v402, 4294901760
    %404 = vmatpush.msra.mxu0 %v403
    %v405 = vand.u32 %v47, 4294901760
    %406 = vmatmul.f32.gmra.mxu0 %v405
    %v407 = vpop.f32.mrf.mxu0
    %v408 = vadd.f32 %v333, %v407
    %v409 = vand.u32 %v49, 4294901760
    %410 = vmatmul.f32.gmra.mxu0 %v409
    %v411 = vpop.f32.mrf.mxu0
    %v412 = vadd.f32 %v339, %v411
    %413 = vdwg.mxu0
    %v414 = vand.u32 %v66, 4294901760
    %415 = vmatpush.msra.mxu0 %v414
    %v416 = vand.u32 %v65, 4294901760
    %417 = vmatpush.msra.mxu0 %v416
    %v418 = vand.u32 %v64, 4294901760
    %419 = vmatpush.msra.mxu0 %v418
    %v420 = vand.u32 %v63, 4294901760
    %421 = vmatpush.msra.mxu0 %v420
    %v422 = vand.u32 %v62, 4294901760
    %423 = vmatpush.msra.mxu0 %v422
    %v424 = vand.u32 %v61, 4294901760
    %425 = vmatpush.msra.mxu0 %v424
    %v426 = vand.u32 %v60, 4294901760
    %427 = vmatpush.msra.mxu0 %v426
    %v428 = vand.u32 %v59, 4294901760
    %429 = vmatpush.msra.mxu0 %v428
    %v430 = vand.u32 %v58, 4294901760
    %431 = vmatpush.msra.mxu0 %v430
    %v432 = vand.u32 %v57, 4294901760
    %433 = vmatpush.msra.mxu0 %v432
    %v434 = vand.u32 %v56, 4294901760
    %435 = vmatpush.msra.mxu0 %v434
    %v436 = vand.u32 %v55, 4294901760
    %437 = vmatpush.msra.mxu0 %v436
    %v438 = vand.u32 %v54, 4294901760
    %439 = vmatpush.msra.mxu0 %v438
    %v440 = vand.u32 %v53, 4294901760
    %441 = vmatpush.msra.mxu0 %v440
    %v442 = vand.u32 %v52, 4294901760
    %443 = vmatpush.msra.mxu0 %v442
    %v444 = vand.u32 %v51, 4294901760
    %445 = vmatpush.msra.mxu0 %v444
    %v446 = vand.u32 %v47, 4294901760
    %447 = vmatmul.f32.gmra.mxu0 %v446
    %v448 = vpop.f32.mrf.mxu0
    %v449 = vadd.f32 %v408, %v448
    %v450 = vand.u32 %v49, 4294901760
    %451 = vmatmul.f32.gmra.mxu0 %v450
    %v452 = vpop.f32.mrf.mxu0
    %v453 = vadd.f32 %v412, %v452
    %454 = vdwg.mxu0
    %v455 = vand.u32 %v82, 4294901760
    %456 = vmatpush.msra.mxu0 %v455
    %v457 = vand.u32 %v81, 4294901760
    %458 = vmatpush.msra.mxu0 %v457
    %v459 = vand.u32 %v80, 4294901760
    %460 = vmatpush.msra.mxu0 %v459
    %v461 = vand.u32 %v79, 4294901760
    %462 = vmatpush.msra.mxu0 %v461
    %v463 = vand.u32 %v78, 4294901760
    %464 = vmatpush.msra.mxu0 %v463
    %v465 = vand.u32 %v77, 4294901760
    %466 = vmatpush.msra.mxu0 %v465
    %v467 = vand.u32 %v76, 4294901760
    %468 = vmatpush.msra.mxu0 %v467
    %v469 = vand.u32 %v75, 4294901760
    %470 = vmatpush.msra.mxu0 %v469
    %v471 = vand.u32 %v74, 4294901760
    %472 = vmatpush.msra.mxu0 %v471
    %v473 = vand.u32 %v73, 4294901760
    %474 = vmatpush.msra.mxu0 %v473
    %v475 = vand.u32 %v72, 4294901760
    %476 = vmatpush.msra.mxu0 %v475
    %v477 = vand.u32 %v71, 4294901760
    %478 = vmatpush.msra.mxu0 %v477
    %v479 = vand.u32 %v70, 4294901760
    %480 = vmatpush.msra.mxu0 %v479
    %v481 = vand.u32 %v69, 4294901760
    %482 = vmatpush.msra.mxu0 %v481
    %v483 = vand.u32 %v68, 4294901760
    %484 = vmatpush.msra.mxu0 %v483
    %v485 = vand.u32 %v67, 4294901760
    %486 = vmatpush.msra.mxu0 %v485
    %v487 = vand.u32 %v48, 4294901760
    %v488 = vsub.f32 %v48, %v487
    %v489 = vand.u32 %v488, 4294901760
    %v490 = vsub.f32 %v488, %v489
    %v491 = vand.u32 %v490, 4294901760
    %492 = vmatmul.f32.gmra.mxu0 %v491
    %v493 = vpop.f32.mrf.mxu0
    %v494 = vadd.f32 %v449, %v493
    %v495 = vand.u32 %v50, 4294901760
    %v496 = vsub.f32 %v50, %v495
    %v497 = vand.u32 %v496, 4294901760
    %v498 = vsub.f32 %v496, %v497
    %v499 = vand.u32 %v498, 4294901760
    %500 = vmatmul.f32.gmra.mxu0 %v499
    %v501 = vpop.f32.mrf.mxu0
    %v502 = vadd.f32 %v453, %v501
    %503 = vdwg.mxu0
    %v504 = vand.u32 %v82, 4294901760
    %v505 = vsub.f32 %v82, %v504
    %v506 = vand.u32 %v505, 4294901760
    %v507 = vsub.f32 %v505, %v506
    %v508 = vand.u32 %v507, 4294901760
    %509 = vmatpush.msra.mxu0 %v508
    %v510 = vand.u32 %v81, 4294901760
    %v511 = vsub.f32 %v81, %v510
    %v512 = vand.u32 %v511, 4294901760
    %v513 = vsub.f32 %v511, %v512
    %v514 = vand.u32 %v513, 4294901760
    %515 = vmatpush.msra.mxu0 %v514
    %v516 = vand.u32 %v80, 4294901760
    %v517 = vsub.f32 %v80, %v516
    %v518 = vand.u32 %v517, 4294901760
    %v519 = vsub.f32 %v517, %v518
    %v520 = vand.u32 %v519, 4294901760
    %521 = vmatpush.msra.mxu0 %v520
    %v522 = vand.u32 %v79, 4294901760
    %v523 = vsub.f32 %v79, %v522
    %v524 = vand.u32 %v523, 4294901760
    %v525 = vsub.f32 %v523, %v524
    %v526 = vand.u32 %v525, 4294901760
    %527 = vmatpush.msra.mxu0 %v526
    %v528 = vand.u32 %v78, 4294901760
    %v529 = vsub.f32 %v78, %v528
    %v530 = vand.u32 %v529, 4294901760
    %v531 = vsub.f32 %v529, %v530
    %v532 = vand.u32 %v531, 4294901760
    %533 = vmatpush.msra.mxu0 %v532
    %v534 = vand.u32 %v77, 4294901760
    %v535 = vsub.f32 %v77, %v534
    %v536 = vand.u32 %v535, 4294901760
    %v537 = vsub.f32 %v535, %v536
    %v538 = vand.u32 %v537, 4294901760
    %539 = vmatpush.msra.mxu0 %v538
    %v540 = vand.u32 %v76, 4294901760
    %v541 = vsub.f32 %v76, %v540
    %v542 = vand.u32 %v541, 4294901760
    %v543 = vsub.f32 %v541, %v542
    %v544 = vand.u32 %v543, 4294901760
    %545 = vmatpush.msra.mxu0 %v544
    %v546 = vand.u32 %v75, 4294901760
    %v547 = vsub.f32 %v75, %v546
    %v548 = vand.u32 %v547, 4294901760
    %v549 = vsub.f32 %v547, %v548
    %v550 = vand.u32 %v549, 4294901760
    %551 = vmatpush.msra.mxu0 %v550
    %v552 = vand.u32 %v74, 4294901760
    %v553 = vsub.f32 %v74, %v552
    %v554 = vand.u32 %v553, 4294901760
    %v555 = vsub.f32 %v553, %v554
    %v556 = vand.u32 %v555, 4294901760
    %557 = vmatpush.msra.mxu0 %v556
    %v558 = vand.u32 %v73, 4294901760
    %v559 = vsub.f32 %v73, %v558
    %v560 = vand.u32 %v559, 4294901760
    %v561 = vsub.f32 %v559, %v560
    %v562 = vand.u32 %v561, 4294901760
    %563 = vmatpush.msra.mxu0 %v562
    %v564 = vand.u32 %v72, 4294901760
    %v565 = vsub.f32 %v72, %v564
    %v566 = vand.u32 %v565, 4294901760
    %v567 = vsub.f32 %v565, %v566
    %v568 = vand.u32 %v567, 4294901760
    %569 = vmatpush.msra.mxu0 %v568
    %v570 = vand.u32 %v71, 4294901760
    %v571 = vsub.f32 %v71, %v570
    %v572 = vand.u32 %v571, 4294901760
    %v573 = vsub.f32 %v571, %v572
    %v574 = vand.u32 %v573, 4294901760
    %575 = vmatpush.msra.mxu0 %v574
    %v576 = vand.u32 %v70, 4294901760
    %v577 = vsub.f32 %v70, %v576
    %v578 = vand.u32 %v577, 4294901760
    %v579 = vsub.f32 %v577, %v578
    %v580 = vand.u32 %v579, 4294901760
    %581 = vmatpush.msra.mxu0 %v580
    %v582 = vand.u32 %v69, 4294901760
    %v583 = vsub.f32 %v69, %v582
    %v584 = vand.u32 %v583, 4294901760
    %v585 = vsub.f32 %v583, %v584
    %v586 = vand.u32 %v585, 4294901760
    %587 = vmatpush.msra.mxu0 %v586
    %v588 = vand.u32 %v68, 4294901760
    %v589 = vsub.f32 %v68, %v588
    %v590 = vand.u32 %v589, 4294901760
    %v591 = vsub.f32 %v589, %v590
    %v592 = vand.u32 %v591, 4294901760
    %593 = vmatpush.msra.mxu0 %v592
    %v594 = vand.u32 %v67, 4294901760
    %v595 = vsub.f32 %v67, %v594
    %v596 = vand.u32 %v595, 4294901760
    %v597 = vsub.f32 %v595, %v596
    %v598 = vand.u32 %v597, 4294901760
    %599 = vmatpush.msra.mxu0 %v598
    %v600 = vand.u32 %v48, 4294901760
    %601 = vmatmul.f32.gmra.mxu0 %v600
    %v602 = vpop.f32.mrf.mxu0
    %v603 = vadd.f32 %v494, %v602
    %v604 = vand.u32 %v50, 4294901760
    %605 = vmatmul.f32.gmra.mxu0 %v604
    %v606 = vpop.f32.mrf.mxu0
    %v607 = vadd.f32 %v502, %v606
    %608 = vdwg.mxu0
    %v609 = vand.u32 %v82, 4294901760
    %v610 = vsub.f32 %v82, %v609
    %611 = vmatpush.msra.mxu0 %v610
    %v612 = vand.u32 %v81, 4294901760
    %v613 = vsub.f32 %v81, %v612
    %614 = vmatpush.msra.mxu0 %v613
    %v615 = vand.u32 %v80, 4294901760
    %v616 = vsub.f32 %v80, %v615
    %617 = vmatpush.msra.mxu0 %v616
    %v618 = vand.u32 %v79, 4294901760
    %v619 = vsub.f32 %v79, %v618
    %620 = vmatpush.msra.mxu0 %v619
    %v621 = vand.u32 %v78, 4294901760
    %v622 = vsub.f32 %v78, %v621
    %623 = vmatpush.msra.mxu0 %v622
    %v624 = vand.u32 %v77, 4294901760
    %v625 = vsub.f32 %v77, %v624
    %626 = vmatpush.msra.mxu0 %v625
    %v627 = vand.u32 %v76, 4294901760
    %v628 = vsub.f32 %v76, %v627
    %629 = vmatpush.msra.mxu0 %v628
    %v630 = vand.u32 %v75, 4294901760
    %v631 = vsub.f32 %v75, %v630
    %632 = vmatpush.msra.mxu0 %v631
    %v633 = vand.u32 %v74, 4294901760
    %v634 = vsub.f32 %v74, %v633
    %635 = vmatpush.msra.mxu0 %v634
    %v636 = vand.u32 %v73, 4294901760
    %v637 = vsub.f32 %v73, %v636
    %638 = vmatpush.msra.mxu0 %v637
    %v639 = vand.u32 %v72, 4294901760
    %v640 = vsub.f32 %v72, %v639
    %641 = vmatpush.msra.mxu0 %v640
    %v642 = vand.u32 %v71, 4294901760
    %v643 = vsub.f32 %v71, %v642
    %644 = vmatpush.msra.mxu0 %v643
    %v645 = vand.u32 %v70, 4294901760
    %v646 = vsub.f32 %v70, %v645
    %647 = vmatpush.msra.mxu0 %v646
    %v648 = vand.u32 %v69, 4294901760
    %v649 = vsub.f32 %v69, %v648
    %650 = vmatpush.msra.mxu0 %v649
    %v651 = vand.u32 %v68, 4294901760
    %v652 = vsub.f32 %v68, %v651
    %653 = vmatpush.msra.mxu0 %v652
    %v654 = vand.u32 %v67, 4294901760
    %v655 = vsub.f32 %v67, %v654
    %656 = vmatpush.msra.mxu0 %v655
    %v657 = vand.u32 %v48, 4294901760
    %v658 = vsub.f32 %v48, %v657
    %659 = vmatmul.f32.gmra.mxu0 %v658
    %v660 = vpop.f32.mrf.mxu0
    %v661 = vadd.f32 %v603, %v660
    %v662 = vand.u32 %v50, 4294901760
    %v663 = vsub.f32 %v50, %v662
    %664 = vmatmul.f32.gmra.mxu0 %v663
    %v665 = vpop.f32.mrf.mxu0
    %v666 = vadd.f32 %v607, %v665
    %667 = vdwg.mxu0
    %v668 = vand.u32 %v82, 4294901760
    %669 = vmatpush.msra.mxu0 %v668
    %v670 = vand.u32 %v81, 4294901760
    %671 = vmatpush.msra.mxu0 %v670
    %v672 = vand.u32 %v80, 4294901760
    %673 = vmatpush.msra.mxu0 %v672
    %v674 = vand.u32 %v79, 4294901760
    %675 = vmatpush.msra.mxu0 %v674
    %v676 = vand.u32 %v78, 4294901760
    %677 = vmatpush.msra.mxu0 %v676
    %v678 = vand.u32 %v77, 4294901760
    %679 = vmatpush.msra.mxu0 %v678
    %v680 = vand.u32 %v76, 4294901760
    %681 = vmatpush.msra.mxu0 %v680
    %v682 = vand.u32 %v75, 4294901760
    %683 = vmatpush.msra.mxu0 %v682
    %v684 = vand.u32 %v74, 4294901760
    %685 = vmatpush.msra.mxu0 %v684
    %v686 = vand.u32 %v73, 4294901760
    %687 = vmatpush.msra.mxu0 %v686
    %v688 = vand.u32 %v72, 4294901760
    %689 = vmatpush.msra.mxu0 %v688
    %v690 = vand.u32 %v71, 4294901760
    %691 = vmatpush.msra.mxu0 %v690
    %v692 = vand.u32 %v70, 4294901760
    %693 = vmatpush.msra.mxu0 %v692
    %v694 = vand.u32 %v69, 4294901760
    %695 = vmatpush.msra.mxu0 %v694
    %v696 = vand.u32 %v68, 4294901760
    %697 = vmatpush.msra.mxu0 %v696
    %v698 = vand.u32 %v67, 4294901760
    %699 = vmatpush.msra.mxu0 %v698
    %v700 = vand.u32 %v48, 4294901760
    %v701 = vsub.f32 %v48, %v700
    %v702 = vand.u32 %v701, 4294901760
    %703 = vmatmul.f32.gmra.mxu0 %v702
    %v704 = vpop.f32.mrf.mxu0
    %v705 = vadd.f32 %v661, %v704
    %v706 = vand.u32 %v50, 4294901760
    %v707 = vsub.f32 %v50, %v706
    %v708 = vand.u32 %v707, 4294901760
    %709 = vmatmul.f32.gmra.mxu0 %v708
    %v710 = vpop.f32.mrf.mxu0
    %v711 = vadd.f32 %v666, %v710
    %712 = vdwg.mxu0
    %v713 = vand.u32 %v82, 4294901760
    %v714 = vsub.f32 %v82, %v713
    %v715 = vand.u32 %v714, 4294901760
    %716 = vmatpush.msra.mxu0 %v715
    %v717 = vand.u32 %v81, 4294901760
    %v718 = vsub.f32 %v81, %v717
    %v719 = vand.u32 %v718, 4294901760
    %720 = vmatpush.msra.mxu0 %v719
    %v721 = vand.u32 %v80, 4294901760
    %v722 = vsub.f32 %v80, %v721
    %v723 = vand.u32 %v722, 4294901760
    %724 = vmatpush.msra.mxu0 %v723
    %v725 = vand.u32 %v79, 4294901760
    %v726 = vsub.f32 %v79, %v725
    %v727 = vand.u32 %v726, 4294901760
    %728 = vmatpush.msra.mxu0 %v727
    %v729 = vand.u32 %v78, 4294901760
    %v730 = vsub.f32 %v78, %v729
    %v731 = vand.u32 %v730, 4294901760
    %732 = vmatpush.msra.mxu0 %v731
    %v733 = vand.u32 %v77, 4294901760
    %v734 = vsub.f32 %v77, %v733
    %v735 = vand.u32 %v734, 4294901760
    %736 = vmatpush.msra.mxu0 %v735
    %v737 = vand.u32 %v76, 4294901760
    %v738 = vsub.f32 %v76, %v737
    %v739 = vand.u32 %v738, 4294901760
    %740 = vmatpush.msra.mxu0 %v739
    %v741 = vand.u32 %v75, 4294901760
    %v742 = vsub.f32 %v75, %v741
    %v743 = vand.u32 %v742, 4294901760
    %744 = vmatpush.msra.mxu0 %v743
    %v745 = vand.u32 %v74, 4294901760
    %v746 = vsub.f32 %v74, %v745
    %v747 = vand.u32 %v746, 4294901760
    %748 = vmatpush.msra.mxu0 %v747
    %v749 = vand.u32 %v73, 4294901760
    %v750 = vsub.f32 %v73, %v749
    %v751 = vand.u32 %v750, 4294901760
    %752 = vmatpush.msra.mxu0 %v751
    %v753 = vand.u32 %v72, 4294901760
    %v754 = vsub.f32 %v72, %v753
    %v755 = vand.u32 %v754, 4294901760
    %756 = vmatpush.msra.mxu0 %v755
    %v757 = vand.u32 %v71, 4294901760
    %v758 = vsub.f32 %v71, %v757
    %v759 = vand.u32 %v758, 4294901760
    %760 = vmatpush.msra.mxu0 %v759
    %v761 = vand.u32 %v70, 4294901760
    %v762 = vsub.f32 %v70, %v761
    %v763 = vand.u32 %v762, 4294901760
    %764 = vmatpush.msra.mxu0 %v763
    %v765 = vand.u32 %v69, 4294901760
    %v766 = vsub.f32 %v69, %v765
    %v767 = vand.u32 %v766, 4294901760
    %768 = vmatpush.msra.mxu0 %v767
    %v769 = vand.u32 %v68, 4294901760
    %v770 = vsub.f32 %v68, %v769
    %v771 = vand.u32 %v770, 4294901760
    %772 = vmatpush.msra.mxu0 %v771
    %v773 = vand.u32 %v67, 4294901760
    %v774 = vsub.f32 %v67, %v773
    %v775 = vand.u32 %v774, 4294901760
    %776 = vmatpush.msra.mxu0 %v775
    %v777 = vand.u32 %v48, 4294901760
    %778 = vmatmul.f32.gmra.mxu0 %v777
    %v779 = vpop.f32.mrf.mxu0
    %v780 = vadd.f32 %v705, %v779
    %v781 = vand.u32 %v50, 4294901760
    %782 = vmatmul.f32.gmra.mxu0 %v781
    %v783 = vpop.f32.mrf.mxu0
    %v784 = vadd.f32 %v711, %v783
    %785 = vdwg.mxu0
    %v786 = vand.u32 %v82, 4294901760
    %787 = vmatpush.msra.mxu0 %v786
    %v788 = vand.u32 %v81, 4294901760
    %789 = vmatpush.msra.mxu0 %v788
    %v790 = vand.u32 %v80, 4294901760
    %791 = vmatpush.msra.mxu0 %v790
    %v792 = vand.u32 %v79, 4294901760
    %793 = vmatpush.msra.mxu0 %v792
    %v794 = vand.u32 %v78, 4294901760
    %795 = vmatpush.msra.mxu0 %v794
    %v796 = vand.u32 %v77, 4294901760
    %797 = vmatpush.msra.mxu0 %v796
    %v798 = vand.u32 %v76, 4294901760
    %799 = vmatpush.msra.mxu0 %v798
    %v800 = vand.u32 %v75, 4294901760
    %801 = vmatpush.msra.mxu0 %v800
    %v802 = vand.u32 %v74, 4294901760
    %803 = vmatpush.msra.mxu0 %v802
    %v804 = vand.u32 %v73, 4294901760
    %805 = vmatpush.msra.mxu0 %v804
    %v806 = vand.u32 %v72, 4294901760
    %807 = vmatpush.msra.mxu0 %v806
    %v808 = vand.u32 %v71, 4294901760
    %809 = vmatpush.msra.mxu0 %v808
    %v810 = vand.u32 %v70, 4294901760
    %811 = vmatpush.msra.mxu0 %v810
    %v812 = vand.u32 %v69, 4294901760
    %813 = vmatpush.msra.mxu0 %v812
    %v814 = vand.u32 %v68, 4294901760
    %815 = vmatpush.msra.mxu0 %v814
    %v816 = vand.u32 %v67, 4294901760
    %817 = vmatpush.msra.mxu0 %v816
    %v818 = vand.u32 %v48, 4294901760
    %819 = vmatmul.f32.gmra.mxu0 %v818
    %v820 = vpop.f32.mrf.mxu0
    %v821 = vadd.f32 %v780, %v820
    %v822 = vand.u32 %v50, 4294901760
    %823 = vmatmul.f32.gmra.mxu0 %v822
    %v824 = vpop.f32.mrf.mxu0
    %v825 = vadd.f32 %v784, %v824
    %826 = vdwg.mxu0
    %v827 = vmul.f32 %v821, 11.313708
    %v828 = vmul.f32 %v825, 11.313708
    %829 = vst [vmem:[#allocation5] sm:$0xff] %v827
    %830 = vst [vmem:[#allocation5 + $0x8] sm:$0xff] %v828
    // Predicated region
    $region14: #{tpu_custom_call.1} parent=1 // pred_check
      _
    $region15: #{tpu_custom_call.1} parent=1 // pred_check_branch
      %832 = sbr.rel (0) target = $region17
    $region16: #{tpu_custom_call.1} parent=1 // pred_region
      %834 = vsyncadd [#allocation4], 0
      %s835 = sshll.u32 [#allocation5], 4
      %s836 = int_to_ptr.vmem [resolvable:$true] %s835
      %s837 = sshll.u32 %s2, 4
      %s838 = int_to_ptr.hbm [resolvable:$true] %s837
      %843 = dma.vmem_to_hbm [thread:$0]  %s836, 256, %s838, [#allocation4], 128, 128, 8
    $region17: #{tpu_custom_call.1} parent=1 // pred_fallthru
      _
    // Predicated region
    $region18: #{tpu_custom_call.1} parent=1 // pred_check
      _
    $region19: #{tpu_custom_call.1} parent=1 // pred_check_branch
      %845 = sbr.rel (0) target = $region21
    $region20: #{tpu_custom_call.1} parent=1 // pred_region
      %847 = dma.done [#allocation4], 256
    $region21: #{tpu_custom_call.1} parent=1 // pred_fallthru
      _
    %848 = vsyncpa [#allocation3], 1
    %849 = vsyncpa [#allocation4], 1

</llo_original>
